<compile_context>
chip_gen: v5e
topology: v5e:2x2
jax: 0.10.0
libtpu: 0.0.40
codegen_flags: <defaults>
</compile_context>

<pallas_src>
import functools

import jax
import jax.numpy as jnp
import numpy as np
from jax.experimental import pallas as pl
from jax.experimental.pallas import tpu as pltpu


def _round_up(a, b):
    return (a + b - 1) // b * b


def _nbytes(shape, dtype):
    return int(np.prod(shape)) * np.dtype(dtype).itemsize


def residual_block_kernel(head_ref, slab_ref, resid_ref, wd_ref, wres_ref,
                          wskip_ref, bskip_ref, res_ref, skip_ref, carry_ref,
                          *, kernel_size, dilation):
    # head_ref:  (1, C, W)   first I cols of the causally-padded frame, right-
    #                        aligned into W = round_up(I, 128) lanes
    # slab_ref:  (1, C, Lt)  causally shifted conv-input block (compute dtype)
    # resid_ref: (1, C, Lt)  residual tail x[..., I:] + b_res   (f32)
    # wd_ref:    (K, C, C)   dilated-conv weight, wd[j] = w_dil[:, :, j]
    # wres_ref:  (C, C)      1x1 residual-conv weight
    # wskip_ref: (S, C)      1x1 skip-conv weight
    # bskip_ref: (S, 1)      skip-conv bias (f32)
    # res_ref:   (1, C, Lt)  residual output block
    # skip_ref:  (1, S, Lt)  skip output block
    # carry_ref: (C, W)      VMEM scratch: halo carried across time tiles
    t = pl.program_id(1)
    ignore = (kernel_size - 1) * dilation
    halo_w = carry_ref.shape[-1]          # multiple of 128, >= ignore
    lt = slab_ref.shape[-1]

    @pl.when(t == 0)
    def _():
        carry_ref[...] = head_ref[0]      # reset per batch element

    block = slab_ref[0]                                          # (C, Lt)
    # 128-aligned concat: carry holds the halo in its last `ignore` lanes.
    window = jnp.concatenate([carry_ref[...], block], axis=-1)   # (C, W + Lt)
    carry_ref[...] = window[:, lt:lt + halo_w]                   # halo for next tile

    # Dilated causal conv: K small MXU matmuls over lane-shifted taps.
    base = halo_w - ignore
    y = jnp.dot(wd_ref[0], window[:, base:base + lt],
                preferred_element_type=jnp.float32)              # (C, Lt) f32
    for j in range(1, kernel_size):
        tap = window[:, base + j * dilation: base + j * dilation + lt]
        y = y + jnp.dot(wd_ref[j], tap, preferred_element_type=jnp.float32)

    # Gated activation relu(y) * tanh(y) in f32 (VPU + EUP).
    gated = jnp.maximum(y, 0.0) * jnp.tanh(y)
    # TODO(synk): nn.Dropout is identity in eval mode; training-mode dropout
    # (pltpu.prng_random_bits mask + inverted scaling) is not implemented.
    g = gated.astype(wres_ref.dtype)

    # Residual 1x1 conv: bias is already folded into resid_ref in the wrapper.
    res = jnp.dot(wres_ref[...], g, preferred_element_type=jnp.float32)
    res_ref[0] = (res + resid_ref[0]).astype(res_ref.dtype)

    # Skip 1x1 conv.
    skp = jnp.dot(wskip_ref[...], g, preferred_element_type=jnp.float32)
    skip_ref[0] = (skp + bskip_ref[...]).astype(skip_ref.dtype)


@functools.partial(jax.jit, static_argnames=(
    "kernel_size", "dilation", "skip_size", "time_tile", "compute_dtype"))
def residual_block(x, w_dil, w_res, b_res, w_skip, b_skip, *,
                   kernel_size, dilation, skip_size,
                   time_tile=4096, compute_dtype=jnp.bfloat16):
    """x: (B, C, T); w_dil: (C, C, K); w_res: (C, C); w_skip: (S, C).

    Returns (res, skip): res (B, C, T - I), skip (B, S, skip_size),
    with I = (kernel_size - 1) * dilation.
    """
    B, C, T = x.shape
    S = w_skip.shape[0]
    K = kernel_size
    I = (K - 1) * dilation              # causal "ignore index"
    Lp = I // 2                         # PyTorch 'same' left padding
    Rp = I - Lp                         # PyTorch 'same' right padding
    L1 = T - I                          # output length after causal slice
    assert I >= 1 and L1 > 0 and 0 < skip_size <= L1

    f32 = jnp.float32
    W = max(128, _round_up(I, 128))     # halo-carry width (lane-aligned)

    # ---- time tile: lane-dense (multiple of 128), VMEM-budget aware. --------
    Lt = max(128, min(_round_up(L1, 128), _round_up(time_tile, 128)))

    def vmem_estimate(lt):
        streamed = (_nbytes((C, lt), compute_dtype)      # conv-input slab
                    + _nbytes((C, lt), f32)              # residual tail (+bias)
                    + _nbytes((C, lt), x.dtype)          # res output
                    + _nbytes((S, lt), x.dtype))         # skip output
        resident = (_nbytes((K, C, C), compute_dtype)
                    + _nbytes((C, C), compute_dtype)
                    + _nbytes((S, C), compute_dtype)
                    + _nbytes((S, 128), f32)
                    + 3 * _nbytes((C, W), compute_dtype))  # head + carry
        temps = 4 * _nbytes((C + S, lt), f32)            # y / gated / epilogue
        return 2 * streamed + resident + temps           # streams double-buffered

    VMEM_BUDGET = 40 * 1024 * 1024      # conservative: fits v7x's 64 MiB / TC
    while Lt > 128 and vmem_estimate(Lt) > VMEM_BUDGET:
        Lt = max(128, _round_up(Lt // 2, 128))
    vmem_limit = int(min(vmem_estimate(Lt) + 8 * 1024 * 1024, 48 * 1024 * 1024))

    L1_pad = _round_up(L1, Lt)
    n_t = L1_pad // Lt
    # NOTE: batch is the "parallel" grid axis (v7x megacore sharding). For
    # B == 1 with long sequences the time axis stays sequential (halo carry);
    # TODO(synk): per-chunk heads would allow splitting time across cores too.

    # ---- streamed operands. Producers are slice/pad/cast/add chains that XLA
    #      may fuse into the input DMA (allow_input_fusion); nothing is
    #      K*-duplicated in HBM.
    # Conv frame xpad = [zeros(Lp), x]; causal outputs 0..L1-1 read xpad[0:T].
    # slab = xpad[I:T] = x[:, :, Rp:Rp+L1]; head = xpad[0:I] right-aligned in W.
    slab = jnp.pad(x[:, :, Rp:Rp + L1].astype(compute_dtype),
                   ((0, 0), (0, 0), (0, L1_pad - L1)))
    head = jnp.pad(x[:, :, :Rp].astype(compute_dtype),
                   ((0, 0), (0, 0), (W - I + Lp, 0)))
    # Residual tail with the res-conv bias folded in (only C rows, f32).
    resid = jnp.pad(x[:, :, I:].astype(f32) + b_res.astype(f32)[None, :, None],
                    ((0, 0), (0, 0), (0, L1_pad - L1)))

    # ---- resident weights.
    wd = jnp.transpose(w_dil, (2, 0, 1)).astype(compute_dtype)   # (K, C, C)
    wres = w_res.astype(compute_dtype)                           # (C, C)
    wskip = w_skip.astype(compute_dtype)                         # (S, C)
    bskip = b_skip.reshape(S, 1).astype(f32)                     # (S, 1)

    kernel = functools.partial(residual_block_kernel,
                               kernel_size=K, dilation=dilation)

    res_pad, skip_pad = pl.pallas_call(
        kernel,
        out_shape=(jax.ShapeDtypeStruct((B, C, L1_pad), x.dtype),
                   jax.ShapeDtypeStruct((B, S, L1_pad), x.dtype)),
        grid_spec=pltpu.PrefetchScalarGridSpec(
            num_scalar_prefetch=0,
            grid=(B, n_t),
            in_specs=[
                pl.BlockSpec((1, C, W), lambda b, t: (b, 0, 0)),    # head
                pl.BlockSpec((1, C, Lt), lambda b, t: (b, 0, t)),   # conv slab
                pl.BlockSpec((1, C, Lt), lambda b, t: (b, 0, t)),   # residual tail
                pl.BlockSpec((K, C, C), lambda b, t: (0, 0, 0)),    # dilated weight
                pl.BlockSpec((C, C), lambda b, t: (0, 0)),          # res 1x1 weight
                pl.BlockSpec((S, C), lambda b, t: (0, 0)),          # skip 1x1 weight
                pl.BlockSpec((S, 1), lambda b, t: (0, 0)),          # skip bias
            ],
            out_specs=(pl.BlockSpec((1, C, Lt), lambda b, t: (b, 0, t)),
                       pl.BlockSpec((1, S, Lt), lambda b, t: (b, 0, t))),
            scratch_shapes=[pltpu.VMEM((C, W), compute_dtype)],
        ),
        compiler_params=pltpu.CompilerParams(
            dimension_semantics=("parallel", "arbitrary"),
            vmem_limit_bytes=vmem_limit,
            allow_input_fusion=[True, True, True, False, False, False, False]),
    )(head, slab, resid, wd, wres, wskip, bskip)

    res = res_pad[:, :, :L1]
    skip = skip_pad[:, :, L1 - skip_size:L1]
    return res, skip


def ref_forward(x, w_dil, w_res, b_res, w_skip, b_skip, *,
                kernel_size, dilation, skip_size):
    """Pure-JAX reference reproducing PyTorch semantics exactly."""
    B, C, T = x.shape
    K = kernel_size
    I = (K - 1) * dilation
    Lp = I // 2
    Rp = I - Lp
    # PyTorch Conv1d(padding='same'): pad left Lp, right Rp, cross-correlate.
    xpad = jnp.pad(x, ((0, 0), (0, 0), (Lp, Rp)))
    y = jnp.zeros((B, C, T), jnp.float32)
    for j in range(K):
        y = y + jnp.einsum('oc,bct->bot', w_dil[:, :, j],
                           xpad[:, :, j * dilation: j * dilation + T])
    y = y[..., : T - I]                              # causal slice
    gated = jax.nn.relu(y) * jnp.tanh(y)             # (dropout = identity, eval)
    res = jnp.einsum('oc,bct->bot', w_res, gated) + b_res[None, :, None]
    res = res + x[..., -res.shape[-1]:]
    skip = jnp.einsum('sc,bct->bst', w_skip, gated) + b_skip[None, :, None]
    return res, skip[..., -skip_size:]


if __name__ == "__main__":
    def make_case(key, B, C, S, K, d, T):
        k1, k2, k3, k4, k5, k6 = jax.random.split(key, 6)
        x = jax.random.normal(k1, (B, C, T), dtype=jnp.float32)
        w_dil = jax.random.normal(k2, (C, C, K), dtype=jnp.float32) * 0.3
        w_res = jax.random.normal(k3, (C, C), dtype=jnp.float32) * 0.3
        b_res = jax.random.normal(k4, (C,), dtype=jnp.float32) * 0.1
        w_skip = jax.random.normal(k5, (S, C), dtype=jnp.float32) * 0.3
        b_skip = jax.random.normal(k6, (S,), dtype=jnp.float32) * 0.1
        return x, w_dil, w_res, b_res, w_skip, b_skip

    # ---- Case 1: module-sized small config (single time tile). --------------
    B, C, S = 4, 8, 4
    K, d, T, skip_size = 2, 2, 64, 16
    L1 = T - (K - 1) * d
    args = make_case(jax.random.PRNGKey(0), B, C, S, K, d, T)
    res_ref, skip_ref = ref_forward(*args, kernel_size=K, dilation=d,
                                    skip_size=skip_size)

    # f32 MXU operands: tight structural check of the kernel.
    res32, skip32 = residual_block(*args, kernel_size=K, dilation=d,
                                   skip_size=skip_size,
                                   compute_dtype=jnp.float32)
    jax.block_until_ready((res32, skip32))
    np.testing.assert_allclose(np.asarray(res32), np.asarray(res_ref),
                               rtol=1e-4, atol=1e-4)
    np.testing.assert_allclose(np.asarray(skip32), np.asarray(skip_ref),
                               rtol=1e-4, atol=1e-4)

    # bf16 MXU operands (default, f32 accumulation): relaxed tolerance.
    res_out, skip_out = residual_block(*args, kernel_size=K, dilation=d,
                                       skip_size=skip_size)
    jax.block_until_ready((res_out, skip_out))
    assert res_out.shape == (B, C, L1)
    assert skip_out.shape == (B, S, skip_size)
    np.testing.assert_allclose(np.asarray(res_out), np.asarray(res_ref),
                               rtol=1e-1, atol=1e-1)
    np.testing.assert_allclose(np.asarray(skip_out), np.asarray(skip_ref),
                               rtol=1e-1, atol=1e-1)

    # ---- Case 2: K=3, multiple time tiles — exercises the halo carry. -------
    B2, C2, S2 = 2, 8, 8
    K2, d2, T2, skip2 = 3, 4, 300, 40
    args2 = make_case(jax.random.PRNGKey(1), B2, C2, S2, K2, d2, T2)
    res_ref2, skip_ref2 = ref_forward(*args2, kernel_size=K2, dilation=d2,
                                      skip_size=skip2)
    res2, skip2_out = residual_block(*args2, kernel_size=K2, dilation=d2,
                                     skip_size=skip2, time_tile=128,
                                     compute_dtype=jnp.float32)
    jax.block_until_ready((res2, skip2_out))
    assert res2.shape == (B2, C2, T2 - (K2 - 1) * d2)
    assert skip2_out.shape == (B2, S2, skip2)
    np.testing.assert_allclose(np.asarray(res2), np.asarray(res_ref2),
                               rtol=5e-4, atol=5e-4)
    np.testing.assert_allclose(np.asarray(skip2_out), np.asarray(skip_ref2),
                               rtol=5e-4, atol=5e-4)

    print("KERNEL_OK")
</pallas_src>

<mosaic_0001>
module attributes {stable_mosaic.version = 11 : i64} {
  func.func @residual_block_kernel(%arg0: i32, %arg1: i32, %arg2: memref<1x8x128xf32, #tpu.memory_space<vmem>>, %arg3: memref<1x8x128xf32, #tpu.memory_space<vmem>>, %arg4: memref<1x8x128xf32, #tpu.memory_space<vmem>>, %arg5: memref<2x8x8xf32, #tpu.memory_space<vmem>>, %arg6: memref<8x8xf32, #tpu.memory_space<vmem>>, %arg7: memref<4x8xf32, #tpu.memory_space<vmem>>, %arg8: memref<4x1xf32, #tpu.memory_space<vmem>>, %arg9: memref<1x8x128xf32, #tpu.memory_space<vmem>>, %arg10: memref<1x4x128xf32, #tpu.memory_space<vmem>>, %arg11: memref<8x128xf32, #tpu.memory_space<vmem>>) attributes {dimension_semantics = [#tpu.dimension_semantics<parallel>, #tpu.dimension_semantics<arbitrary>], iteration_bounds = array<i64: 4, 1>, scalar_prefetch = 0 : i64, scratch_operands = 1 : i64, tpu.core_type = #tpu.core_type<tc>, window_params = [{transform_indices = @transform_0, window_bounds = array<i64: 1, 8, 128>}, {transform_indices = @transform_1, window_bounds = array<i64: 1, 8, 128>}, {transform_indices = @transform_2, window_bounds = array<i64: 1, 8, 128>}, {pipeline_mode = #tpu.pipeline_mode<synchronous>, transform_indices = @transform_3, window_bounds = array<i64: 2, 8, 8>}, {pipeline_mode = #tpu.pipeline_mode<synchronous>, transform_indices = @transform_4, window_bounds = array<i64: 8, 8>}, {pipeline_mode = #tpu.pipeline_mode<synchronous>, transform_indices = @transform_5, window_bounds = array<i64: 4, 8>}, {pipeline_mode = #tpu.pipeline_mode<synchronous>, transform_indices = @transform_6, window_bounds = array<i64: 4, 1>}, {transform_indices = @transform_7, window_bounds = array<i64: 1, 8, 128>}, {transform_indices = @transform_8, window_bounds = array<i64: 1, 4, 128>}]} {
    %c0_i32 = arith.constant 0 : i32
    %0 = arith.cmpi eq, %arg1, %c0_i32 : i32
    %1 = arith.extui %0 : i1 to i32
    %c0_i32_0 = arith.constant 0 : i32
    %2 = arith.cmpi ne, %1, %c0_i32_0 : i32
    scf.if %2 {
      %c0_31 = arith.constant 0 : index
      %c0_32 = arith.constant 0 : index
      %c0_33 = arith.constant 0 : index
      %38 = vector.load %arg2[%c0_31, %c0_32, %c0_33] : memref<1x8x128xf32, #tpu.memory_space<vmem>>, vector<1x8x128xf32>
      %39 = vector.shape_cast %38 : vector<1x8x128xf32> to vector<8x128xf32>
      %c0_34 = arith.constant 0 : index
      %c0_35 = arith.constant 0 : index
      %40 = vector.load %arg11[%c0_34, %c0_35] : memref<8x128xf32, #tpu.memory_space<vmem>>, vector<8x128xf32>
      tpu.vector_store %arg11[%c0_34, %c0_35], %39 {strides = array<i32>} : memref<8x128xf32, #tpu.memory_space<vmem>>, vector<8x128xf32>,
    } else {
    }
    %c0 = arith.constant 0 : index
    %c0_1 = arith.constant 0 : index
    %c0_2 = arith.constant 0 : index
    %3 = vector.load %arg3[%c0, %c0_1, %c0_2] : memref<1x8x128xf32, #tpu.memory_space<vmem>>, vector<1x8x128xf32>
    %4 = vector.shape_cast %3 : vector<1x8x128xf32> to vector<8x128xf32>
    %c0_3 = arith.constant 0 : index
    %c0_4 = arith.constant 0 : index
    %5 = vector.load %arg11[%c0_3, %c0_4] : memref<8x128xf32, #tpu.memory_space<vmem>>, vector<8x128xf32>
    %6 = tpu.concatenate %5, %4 in 1 : vector<8x128xf32>, vector<8x128xf32> -> vector<8x256xf32>
    %7 = vector.extract_strided_slice %6 {offsets = [0, 128], sizes = [8, 128], strides = [1, 1]} : vector<8x256xf32> to vector<8x128xf32>
    %c0_5 = arith.constant 0 : index
    %c0_6 = arith.constant 0 : index
    %8 = vector.load %arg11[%c0_5, %c0_6] : memref<8x128xf32, #tpu.memory_space<vmem>>, vector<8x128xf32>
    tpu.vector_store %arg11[%c0_5, %c0_6], %7 {strides = array<i32>} : memref<8x128xf32, #tpu.memory_space<vmem>>, vector<8x128xf32>,
    %c0_7 = arith.constant 0 : index
    %c0_8 = arith.constant 0 : index
    %c0_9 = arith.constant 0 : index
    %9 = vector.load %arg5[%c0_7, %c0_8, %c0_9] : memref<2x8x8xf32, #tpu.memory_space<vmem>>, vector<1x8x8xf32>
    %10 = vector.shape_cast %9 : vector<1x8x8xf32> to vector<8x8xf32>
    %11 = vector.extract_strided_slice %6 {offsets = [0, 126], sizes = [8, 128], strides = [1, 1]} : vector<8x256xf32> to vector<8x128xf32>
    %cst = arith.constant dense<0.000000e+00> : vector<8x128xf32>
    %12 = tpu.matmul %10, %11, %cst {dimension_numbers = #tpu.dot_dimension_numbers<[1], [0], [0], [1], [0, 0, 1, 1], [], []>} : vector<8x8xf32>, vector<8x128xf32>, vector<8x128xf32> -> vector<8x128xf32>
    %13 = vector.extract_strided_slice %6 {offsets = [0, 128], sizes = [8, 128], strides = [1, 1]} : vector<8x256xf32> to vector<8x128xf32>
    %c1 = arith.constant 1 : index
    %c0_10 = arith.constant 0 : index
    %c0_11 = arith.constant 0 : index
    %14 = vector.load %arg5[%c1, %c0_10, %c0_11] : memref<2x8x8xf32, #tpu.memory_space<vmem>>, vector<1x8x8xf32>
    %15 = vector.shape_cast %14 : vector<1x8x8xf32> to vector<8x8xf32>
    %cst_12 = arith.constant dense<0.000000e+00> : vector<8x128xf32>
    %16 = tpu.matmul %15, %13, %cst_12 {dimension_numbers = #tpu.dot_dimension_numbers<[1], [0], [0], [1], [0, 0, 1, 1], [], []>} : vector<8x8xf32>, vector<8x128xf32>, vector<8x128xf32> -> vector<8x128xf32>
    %17 = arith.addf %12, %16 : vector<8x128xf32>
    %cst_13 = arith.constant 0.000000e+00 : f32
    %18 = vector.broadcast %cst_13 : f32 to vector<8x128xf32>
    %19 = arith.maximumf %17, %18 : vector<8x128xf32>
    %20 = math.tanh %17 : vector<8x128xf32>
    %21 = arith.mulf %19, %20 : vector<8x128xf32>
    %c0_14 = arith.constant 0 : index
    %c0_15 = arith.constant 0 : index
    %22 = vector.load %arg6[%c0_14, %c0_15] : memref<8x8xf32, #tpu.memory_space<vmem>>, vector<8x8xf32>
    %cst_16 = arith.constant dense<0.000000e+00> : vector<8x128xf32>
    %23 = tpu.matmul %22, %21, %cst_16 {dimension_numbers = #tpu.dot_dimension_numbers<[1], [0], [0], [1], [0, 0, 1, 1], [], []>} : vector<8x8xf32>, vector<8x128xf32>, vector<8x128xf32> -> vector<8x128xf32>
    %c0_17 = arith.constant 0 : index
    %c0_18 = arith.constant 0 : index
    %c0_19 = arith.constant 0 : index
    %24 = vector.load %arg4[%c0_17, %c0_18, %c0_19] : memref<1x8x128xf32, #tpu.memory_space<vmem>>, vector<1x8x128xf32>
    %25 = vector.shape_cast %24 : vector<1x8x128xf32> to vector<8x128xf32>
    %26 = arith.addf %23, %25 : vector<8x128xf32>
    %c0_20 = arith.constant 0 : index
    %c0_21 = arith.constant 0 : index
    %c0_22 = arith.constant 0 : index
    %27 = vector.load %arg9[%c0_20, %c0_21, %c0_22] : memref<1x8x128xf32, #tpu.memory_space<vmem>>, vector<1x8x128xf32>
    %28 = vector.shape_cast %27 : vector<1x8x128xf32> to vector<8x128xf32>
    %29 = vector.shape_cast %26 : vector<8x128xf32> to vector<1x8x128xf32>
    tpu.vector_store %arg9[%c0_20, %c0_21, %c0_22], %29 {strides = array<i32>} : memref<1x8x128xf32, #tpu.memory_space<vmem>>, vector<1x8x128xf32>,
    %c0_23 = arith.constant 0 : index
    %c0_24 = arith.constant 0 : index
    %30 = vector.load %arg7[%c0_23, %c0_24] : memref<4x8xf32, #tpu.memory_space<vmem>>, vector<4x8xf32>
    %cst_25 = arith.constant dense<0.000000e+00> : vector<4x128xf32>
    %31 = tpu.matmul %30, %21, %cst_25 {dimension_numbers = #tpu.dot_dimension_numbers<[1], [0], [0], [1], [0, 0, 1, 1], [], []>} : vector<4x8xf32>, vector<8x128xf32>, vector<4x128xf32> -> vector<4x128xf32>
    %c0_26 = arith.constant 0 : index
    %c0_27 = arith.constant 0 : index
    %32 = vector.load %arg8[%c0_26, %c0_27] : memref<4x1xf32, #tpu.memory_space<vmem>>, vector<4x1xf32>
    %33 = vector.broadcast %32 : vector<4x1xf32> to vector<4x128xf32>
    %34 = arith.addf %31, %33 : vector<4x128xf32>
    %c0_28 = arith.constant 0 : index
    %c0_29 = arith.constant 0 : index
    %c0_30 = arith.constant 0 : index
    %35 = vector.load %arg10[%c0_28, %c0_29, %c0_30] : memref<1x4x128xf32, #tpu.memory_space<vmem>>, vector<1x4x128xf32>
    %36 = vector.shape_cast %35 : vector<1x4x128xf32> to vector<4x128xf32>
    %37 = vector.shape_cast %34 : vector<4x128xf32> to vector<1x4x128xf32>
    tpu.vector_store %arg10[%c0_28, %c0_29, %c0_30], %37 {strides = array<i32>} : memref<1x4x128xf32, #tpu.memory_space<vmem>>, vector<1x4x128xf32>,
    return
  }
  func.func @transform_0(%arg0: i32, %arg1: i32) -> (i32, i32, i32) {
    %c0_i32 = arith.constant 0 : i32
    %c0_i32_0 = arith.constant 0 : i32
    %c0_i32_1 = arith.constant 0 : i32
    return %arg0, %c0_i32, %c0_i32_0 : i32, i32, i32
  }
  func.func @transform_1(%arg0: i32, %arg1: i32) -> (i32, i32, i32) {
    %c0_i32 = arith.constant 0 : i32
    %c0_i32_0 = arith.constant 0 : i32
    return %arg0, %c0_i32, %arg1 : i32, i32, i32
  }
  func.func @transform_2(%arg0: i32, %arg1: i32) -> (i32, i32, i32) {
    %c0_i32 = arith.constant 0 : i32
    %c0_i32_0 = arith.constant 0 : i32
    return %arg0, %c0_i32, %arg1 : i32, i32, i32
  }
  func.func @transform_3(%arg0: i32, %arg1: i32) -> (i32, i32, i32) {
    %c0_i32 = arith.constant 0 : i32
    %c0_i32_0 = arith.constant 0 : i32
    %c0_i32_1 = arith.constant 0 : i32
    %c0_i32_2 = arith.constant 0 : i32
    return %c0_i32, %c0_i32_0, %c0_i32_1 : i32, i32, i32
  }
  func.func @transform_4(%arg0: i32, %arg1: i32) -> (i32, i32) {
    %c0_i32 = arith.constant 0 : i32
    %c0_i32_0 = arith.constant 0 : i32
    %c0_i32_1 = arith.constant 0 : i32
    return %c0_i32, %c0_i32_0 : i32, i32
  }
  func.func @transform_5(%arg0: i32, %arg1: i32) -> (i32, i32) {
    %c0_i32 = arith.constant 0 : i32
    %c0_i32_0 = arith.constant 0 : i32
    %c0_i32_1 = arith.constant 0 : i32
    return %c0_i32, %c0_i32_0 : i32, i32
  }
  func.func @transform_6(%arg0: i32, %arg1: i32) -> (i32, i32) {
    %c0_i32 = arith.constant 0 : i32
    %c0_i32_0 = arith.constant 0 : i32
    %c0_i32_1 = arith.constant 0 : i32
    return %c0_i32, %c0_i32_0 : i32, i32
  }
  func.func @transform_7(%arg0: i32, %arg1: i32) -> (i32, i32, i32) {
    %c0_i32 = arith.constant 0 : i32
    %c0_i32_0 = arith.constant 0 : i32
    return %arg0, %c0_i32, %arg1 : i32, i32, i32
  }
  func.func @transform_8(%arg0: i32, %arg1: i32) -> (i32, i32, i32) {
    %c0_i32 = arith.constant 0 : i32
    %c0_i32_0 = arith.constant 0 : i32
    return %arg0, %c0_i32, %arg1 : i32, i32, i32
  }
}

</mosaic_0001>

<llo_original>
// kernel: residual_block.2
$region0: #{residual_block.2}
  #allocation0 [shape = 'u32[]', space=smem, size = 0x4, offset = 0x4, fixed_abs, tag = 'smem constant byte address 0x4 - core index']
  #allocation1 [shape = 'u32[72,128]{1,0:T(1,128)}', space=vmem, size = 0x9000, scoped, tag = 'internal scratch']
  #allocation2 [shape = 'f32[8,128]{1,0:T(8,128)}', space=vmem, size = 0x1000, scoped, tag = 'scratch operand']
  #allocation3 [shape = 'u32[2048]{0}', space=vmem, size = 0x2000, scoped, tag = 'scoped memory for residual_block.2']
  #allocation4 [shape = 'u32[2048]{0}', space=vmem, size = 0x2000, scoped, tag = 'scoped memory for residual_block.2']
  #allocation5 [shape = 'u32[2048]{0}', space=vmem, size = 0x2000, scoped, tag = 'scoped memory for residual_block.2']
  #allocation6 [shape = 'u32[2048]{0}', space=vmem, size = 0x2000, scoped, tag = 'scoped memory for residual_block.2']
  #allocation7 [shape = 'u32[2048]{0}', space=vmem, size = 0x2000, scoped, tag = 'scoped memory for residual_block.2']
  #allocation8 [shape = 'u32[2048]{0}', space=vmem, size = 0x2000, scoped, tag = 'scoped memory for residual_block.2']
  #allocation9 [shape = 'u32[2048]{0}', space=vmem, size = 0x2000, scoped, tag = 'scoped memory for residual_block.2']
  #allocation10 [shape = 'u32[2048]{0}', space=vmem, size = 0x2000, scoped, tag = 'scoped memory for residual_block.2']
  #allocation11 [shape = 'u32[2048]{0}', space=vmem, size = 0x2000, scoped, tag = 'scoped memory for residual_block.2']
  #allocation12 [shape = 'u32[2048]{0}', space=vmem, size = 0x2000, scoped, tag = 'scoped memory for residual_block.2']
  #allocation13 [shape = 'u32[2048]{0}', space=vmem, size = 0x2000, scoped, tag = 'scoped memory for residual_block.2']
  #allocation14 [shape = 'u32[2048]{0}', space=vmem, size = 0x2000, scoped, tag = 'scoped memory for residual_block.2']
  #allocation15 [shape = 'u32[2048]{0}', space=vmem, size = 0x2000, scoped, tag = 'scoped memory for residual_block.2']
  #allocation16 [shape = 'u32[2048]{0}', space=vmem, size = 0x2000, scoped, tag = 'scoped memory for residual_block.2']
  #allocation17 [shape = 'u32[2048]{0}', space=vmem, size = 0x2000, scoped, tag = 'scoped memory for residual_block.2']
  %s0 = inlined_call_operand.vmem [shape: f32[2,8,8], index: 0, kind: input, shape index: {}]
  %s1 = inlined_call_operand.vmem [shape: f32[8,8], index: 1, kind: input, shape index: {}]
  %s2 = inlined_call_operand.vmem [shape: f32[4,8], index: 2, kind: input, shape index: {}]
  %s3 = inlined_call_operand.vmem [shape: f32[4,1], index: 3, kind: input, shape index: {}]
  %s4 = inlined_call_operand.vmem [shape: f32[4,8,62], index: 4, kind: input, shape index: {}]
  %s5 = inlined_call_operand.<no memory space> [shape: f32[], index: 5, kind: input, shape index: {}]
  %s6 = inlined_call_operand.vmem [shape: f32[4,8,62], index: 6, kind: input, shape index: {}]
  %s7 = inlined_call_operand.vmem [shape: f32[4,8,1], index: 7, kind: input, shape index: {}]
  %s8 = inlined_call_operand.hbm [shape: f32[4,8,128], index: 8, kind: output, shape index: {0}]
  %s9 = inlined_call_operand.vmem [shape: f32[4,4,128], index: 9, kind: output, shape index: {1}]
  %10 = xla_tuple %s8, %s9
  %s11 = sld [smem:[#allocation0]]
  $region73: #{residual_block.2} parent=0
    _
  %s13 = ssub.s32 1, %s11
  %s14 = scalar_select 0, %s13, %s11
  %v15 = vstv %s5
  %v16 = vstv %s5
  %v17 = vstv %s5
  $region1: #{residual_block.2} parent=0
    #allocation18 [shape = 'u8[8192]{0}', space=vmem, size = 0x2000, scoped, tag = 'output window, operand 0']
    #allocation19 [shape = 's32[2]{0}', space=sflag, size = 0x8, scoped, tag = 'scoped memory for residual_block.2']
    %18 = vsyncpa [#allocation19], 0
    %s19 = scalar_lea.sflag [#allocation19], 1
    %20 = vsyncpa %s19, 0
    loop: start=0, step=1, limit=6
    $region2: #{residual_block.2} parent=1 // loop_pre_header
      _
    $region3: #{residual_block.2} parent=1 // loop_header
      %s22 = sphi 0, %s26
      %p23 = scmp.ge.s32.totalorder %s22, 6
      %s29 = sphi 0, %s41
      %s30 = sphi 0, %s37
      %s31 = sphi 0, %s29
      %s32 = sphi 0, %s30
      %s33 = sphi 0, %s31
      %s34 = sphi 0, %s32
      %s48 = sphi 0, %s50
      %s51 = sphi 0, %s48
      %s52 = sphi 0, %s51
      %s68 = sphi 0, %s52
      %s76 = sphi 0, %s78
      %s79 = sphi 0, %s76
      %s80 = sphi 0, %s79
      %s96 = sphi 0, %s80
      %s104 = sphi 0, %s106
      %s107 = sphi 0, %s104
      %s108 = sphi 0, %s107
      %s124 = sphi 0, %s108
      %s128 = sphi 0, %s128
      %s130 = sphi 0, %s128
      %s131 = sphi 0, %s130
      %s145 = sphi 0, %s131
      %s149 = sphi 0, %s149
      %s151 = sphi 0, %s149
      %s152 = sphi 0, %s151
      %s166 = sphi 0, %s152
      %s170 = sphi 0, %s170
      %s172 = sphi 0, %s170
      %s173 = sphi 0, %s172
      %s187 = sphi 0, %s173
      %s191 = sphi 0, %s191
      %s193 = sphi 0, %s191
      %s194 = sphi 0, %s193
      %s208 = sphi 0, %s194
      %s216 = sphi 0, %s218
      %s219 = sphi 0, %s216
      %s220 = sphi 0, %s219
      %s236 = sphi 0, %s220
      %s244 = sphi 0, %s246
      %s247 = sphi 0, %s244
      %s248 = sphi 0, %s247
      %s264 = sphi 0, %s248
    $region4: #{residual_block.2} parent=1 // loop_header_branch
      %25 = sbr.rel (%p23) target = $region8
    $region5: #{residual_block.2} parent=1 // loop_body
      %s27 = ssub.s32 %s22, 1
      %s28 = ssub.s32 %s22, 2
      %s35 = sadd.s32 1, %s30
      %p36 = scmp.ge.s32.totalorder %s35, 1
      %s37 = scalar_select %p36, 0, %s35
      %s38 = sadd.s32 1, %s29
      %s39 = scalar_select %p36, %s38, %s29
      %p40 = scmp.ge.s32.totalorder %s39, 4
      %s41 = scalar_select %p40, 0, %s39
      %s44 = ssub.s32 %s29, %s41
      %s45 = ssub.s32 0, 0
      %s46 = sor.u32 %s44, %s45
      %p47 = scmp.eq.s32.totalorder %s46, 0
      %s49 = sadd.s32 %s48, 1
      %s50 = scalar_select %p47, %s48, %s49
      %p53 = pneg %p47
      %p54 = scmp.eq.s32.totalorder %s22, 3
      %p55 = por %p53, %p54
      %p56 = scmp.ne.s32.totalorder %s48, %s51
      %p57 = scmp.eq.s32.totalorder %s22, 0
      %p58 = por %p56, %p57
      %p59 = scmp.ne.s32.totalorder %s48, %s51
      %p60 = scmp.eq.s32.totalorder %s27, 3
      %p61 = por %p59, %p60
      %p62 = scmp.ne.s32.totalorder %s51, %s52
      %p63 = scmp.eq.s32.totalorder %s27, 0
      %p64 = por %p62, %p63
      %p65 = scmp.ne.s32.totalorder %s51, %s52
      %p66 = scmp.eq.s32.totalorder %s28, 3
      %p67 = por %p65, %p66
      %p69 = scmp.ne.s32.totalorder %s52, %s68
      %p70 = scmp.eq.s32.totalorder %s28, 0
      %p71 = por %p69, %p70
      %s72 = ssub.s32 %s29, %s41
      %s73 = ssub.s32 %s30, %s37
      %s74 = sor.u32 %s72, %s73
      %p75 = scmp.eq.s32.totalorder %s74, 0
      %s77 = sadd.s32 %s76, 1
      %s78 = scalar_select %p75, %s76, %s77
      %p81 = pneg %p75
      %p82 = scmp.eq.s32.totalorder %s22, 3
      %p83 = por %p81, %p82
      %p84 = scmp.ne.s32.totalorder %s76, %s79
      %p85 = scmp.eq.s32.totalorder %s22, 0
      %p86 = por %p84, %p85
      %p87 = scmp.ne.s32.totalorder %s76, %s79
      %p88 = scmp.eq.s32.totalorder %s27, 3
      %p89 = por %p87, %p88
      %p90 = scmp.ne.s32.totalorder %s79, %s80
      %p91 = scmp.eq.s32.totalorder %s27, 0
      %p92 = por %p90, %p91
      %p93 = scmp.ne.s32.totalorder %s79, %s80
      %p94 = scmp.eq.s32.totalorder %s28, 3
      %p95 = por %p93, %p94
      %p97 = scmp.ne.s32.totalorder %s80, %s96
      %p98 = scmp.eq.s32.totalorder %s28, 0
      %p99 = por %p97, %p98
      %s100 = ssub.s32 %s29, %s41
      %s101 = ssub.s32 %s30, %s37
      %s102 = sor.u32 %s100, %s101
      %p103 = scmp.eq.s32.totalorder %s102, 0
      %s105 = sadd.s32 %s104, 1
      %s106 = scalar_select %p103, %s104, %s105
      %p109 = pneg %p103
      %p110 = scmp.eq.s32.totalorder %s22, 3
      %p111 = por %p109, %p110
      %p112 = scmp.ne.s32.totalorder %s104, %s107
      %p113 = scmp.eq.s32.totalorder %s22, 0
      %p114 = por %p112, %p113
      %p115 = scmp.ne.s32.totalorder %s104, %s107
      %p116 = scmp.eq.s32.totalorder %s27, 3
      %p117 = por %p115, %p116
      %p118 = scmp.ne.s32.totalorder %s107, %s108
      %p119 = scmp.eq.s32.totalorder %s27, 0
      %p120 = por %p118, %p119
      %p121 = scmp.ne.s32.totalorder %s107, %s108
      %p122 = scmp.eq.s32.totalorder %s28, 3
      %p123 = por %p121, %p122
      %p125 = scmp.ne.s32.totalorder %s108, %s124
      %p126 = scmp.eq.s32.totalorder %s28, 0
      %p127 = por %p125, %p126
      %s129 = sadd.s32 %s128, 1
      %p132 = scmp.eq.s32.totalorder %s22, 3
      %p133 = scmp.ne.s32.totalorder %s128, %s130
      %p134 = scmp.eq.s32.totalorder %s22, 0
      %p135 = por %p133, %p134
      %p136 = scmp.ne.s32.totalorder %s128, %s130
      %p137 = scmp.eq.s32.totalorder %s27, 3
      %p138 = por %p136, %p137
      %p139 = scmp.ne.s32.totalorder %s130, %s131
      %p140 = scmp.eq.s32.totalorder %s27, 0
      %p141 = por %p139, %p140
      %p142 = scmp.ne.s32.totalorder %s130, %s131
      %p143 = scmp.eq.s32.totalorder %s28, 3
      %p144 = por %p142, %p143
      %p146 = scmp.ne.s32.totalorder %s131, %s145
      %p147 = scmp.eq.s32.totalorder %s28, 0
      %p148 = por %p146, %p147
      %s150 = sadd.s32 %s149, 1
      %p153 = scmp.eq.s32.totalorder %s22, 3
      %p154 = scmp.ne.s32.totalorder %s149, %s151
      %p155 = scmp.eq.s32.totalorder %s22, 0
      %p156 = por %p154, %p155
      %p157 = scmp.ne.s32.totalorder %s149, %s151
      %p158 = scmp.eq.s32.totalorder %s27, 3
      %p159 = por %p157, %p158
      %p160 = scmp.ne.s32.totalorder %s151, %s152
      %p161 = scmp.eq.s32.totalorder %s27, 0
      %p162 = por %p160, %p161
      %p163 = scmp.ne.s32.totalorder %s151, %s152
      %p164 = scmp.eq.s32.totalorder %s28, 3
      %p165 = por %p163, %p164
      %p167 = scmp.ne.s32.totalorder %s152, %s166
      %p168 = scmp.eq.s32.totalorder %s28, 0
      %p169 = por %p167, %p168
      %s171 = sadd.s32 %s170, 1
      %p174 = scmp.eq.s32.totalorder %s22, 3
      %p175 = scmp.ne.s32.totalorder %s170, %s172
      %p176 = scmp.eq.s32.totalorder %s22, 0
      %p177 = por %p175, %p176
      %p178 = scmp.ne.s32.totalorder %s170, %s172
      %p179 = scmp.eq.s32.totalorder %s27, 3
      %p180 = por %p178, %p179
      %p181 = scmp.ne.s32.totalorder %s172, %s173
      %p182 = scmp.eq.s32.totalorder %s27, 0
      %p183 = por %p181, %p182
      %p184 = scmp.ne.s32.totalorder %s172, %s173
      %p185 = scmp.eq.s32.totalorder %s28, 3
      %p186 = por %p184, %p185
      %p188 = scmp.ne.s32.totalorder %s173, %s187
      %p189 = scmp.eq.s32.totalorder %s28, 0
      %p190 = por %p188, %p189
      %s192 = sadd.s32 %s191, 1
      %p195 = scmp.eq.s32.totalorder %s22, 3
      %p196 = scmp.ne.s32.totalorder %s191, %s193
      %p197 = scmp.eq.s32.totalorder %s22, 0
      %p198 = por %p196, %p197
      %p199 = scmp.ne.s32.totalorder %s191, %s193
      %p200 = scmp.eq.s32.totalorder %s27, 3
      %p201 = por %p199, %p200
      %p202 = scmp.ne.s32.totalorder %s193, %s194
      %p203 = scmp.eq.s32.totalorder %s27, 0
      %p204 = por %p202, %p203
      %p205 = scmp.ne.s32.totalorder %s193, %s194
      %p206 = scmp.eq.s32.totalorder %s28, 3
      %p207 = por %p205, %p206
      %p209 = scmp.ne.s32.totalorder %s194, %s208
      %p210 = scmp.eq.s32.totalorder %s28, 0
      %p211 = por %p209, %p210
      %s212 = ssub.s32 %s29, %s41
      %s213 = ssub.s32 %s30, %s37
      %s214 = sor.u32 %s212, %s213
      %p215 = scmp.eq.s32.totalorder %s214, 0
      %s217 = sadd.s32 %s216, 1
      %s218 = scalar_select %p215, %s216, %s217
      %p221 = pneg %p215
      %p222 = scmp.eq.s32.totalorder %s22, 3
      %p223 = por %p221, %p222
      %p224 = scmp.ne.s32.totalorder %s216, %s219
      %p225 = scmp.eq.s32.totalorder %s22, 0
      %p226 = por %p224, %p225
      %p227 = scmp.ne.s32.totalorder %s216, %s219
      %p228 = scmp.eq.s32.totalorder %s27, 3
      %p229 = por %p227, %p228
      %p230 = scmp.ne.s32.totalorder %s219, %s220
      %p231 = scmp.eq.s32.totalorder %s27, 0
      %p232 = por %p230, %p231
      %p233 = scmp.ne.s32.totalorder %s219, %s220
      %p234 = scmp.eq.s32.totalorder %s28, 3
      %p235 = por %p233, %p234
      %p237 = scmp.ne.s32.totalorder %s220, %s236
      %p238 = scmp.eq.s32.totalorder %s28, 0
      %p239 = por %p237, %p238
      %s240 = ssub.s32 %s29, %s41
      %s241 = ssub.s32 %s30, %s37
      %s242 = sor.u32 %s240, %s241
      %p243 = scmp.eq.s32.totalorder %s242, 0
      %s245 = sadd.s32 %s244, 1
      %s246 = scalar_select %p243, %s244, %s245
      %p249 = pneg %p243
      %p250 = scmp.eq.s32.totalorder %s22, 3
      %p251 = por %p249, %p250
      %p252 = scmp.ne.s32.totalorder %s244, %s247
      %p253 = scmp.eq.s32.totalorder %s22, 0
      %p254 = por %p252, %p253
      %p255 = scmp.ne.s32.totalorder %s244, %s247
      %p256 = scmp.eq.s32.totalorder %s27, 3
      %p257 = por %p255, %p256
      %p258 = scmp.ne.s32.totalorder %s247, %s248
      %p259 = scmp.eq.s32.totalorder %s27, 0
      %p260 = por %p258, %p259
      %p261 = scmp.ne.s32.totalorder %s247, %s248
      %p262 = scmp.eq.s32.totalorder %s28, 3
      %p263 = por %p261, %p262
      %p265 = scmp.ne.s32.totalorder %s248, %s264
      %p266 = scmp.eq.s32.totalorder %s28, 0
      %p267 = por %p265, %p266
      %p268 = scmp.le.s32.totalorder 1, %s22
      %p269 = scmp.lt.s32.totalorder %s22, 5
      %p270 = pnand %p268, %p269
      %p271 = pneg %p270
      // Predicated region
      $region9: #{residual_block.2} parent=5 // pred_check
        _
      $region10: #{residual_block.2} parent=5 // pred_check_branch
        %273 = sbr.rel (%p270) target = $region12
      $region11: #{residual_block.2} parent=5 // pred_region
        %s274 = ssub.s32 %s22, 1
        // Predicated region
        $region13: #{residual_block.2} parent=11 // pred_check
          %p275 = pneg %p141
        $region14: #{residual_block.2} parent=11 // pred_check_branch
          %277 = sbr.rel (%p275) target = $region16
        $region15: #{residual_block.2} parent=11 // pred_region
          _
        $region16: #{residual_block.2} parent=11 // pred_fallthru
          _
        // Predicated region
        $region17: #{residual_block.2} parent=11 // pred_check
          %p278 = pneg %p162
        $region18: #{residual_block.2} parent=11 // pred_check_branch
          %280 = sbr.rel (%p278) target = $region20
        $region19: #{residual_block.2} parent=11 // pred_region
          _
        $region20: #{residual_block.2} parent=11 // pred_fallthru
          _
        // Predicated region
        $region21: #{residual_block.2} parent=11 // pred_check
          %p281 = pneg %p183
        $region22: #{residual_block.2} parent=11 // pred_check_branch
          %283 = sbr.rel (%p281) target = $region24
        $region23: #{residual_block.2} parent=11 // pred_region
          _
        $region24: #{residual_block.2} parent=11 // pred_fallthru
          _
        // Predicated region
        $region25: #{residual_block.2} parent=11 // pred_check
          %p284 = pneg %p204
        $region26: #{residual_block.2} parent=11 // pred_check_branch
          %286 = sbr.rel (%p284) target = $region28
        $region27: #{residual_block.2} parent=11 // pred_region
          _
        $region28: #{residual_block.2} parent=11 // pred_fallthru
          _
      $region12: #{residual_block.2} parent=5 // pred_fallthru
        _
      %p287 = scmp.lt.s32.totalorder %s22, 4
      // Predicated region
      $region29: #{residual_block.2} parent=5 // pred_check
        %p288 = pneg %p287
      $region30: #{residual_block.2} parent=5 // pred_check_branch
        %290 = sbr.rel (%p288) target = $region32
      $region31: #{residual_block.2} parent=5 // pred_region
        // Predicated region
        $region33: #{residual_block.2} parent=31 // pred_check
          %p291 = pneg %p58
        $region34: #{residual_block.2} parent=31 // pred_check_branch
          %293 = sbr.rel (%p291) target = $region36
        $region35: #{residual_block.2} parent=31 // pred_region
          %s295 = ssub.s32 1, 0
          %s296 = smul.u32 8, %s295
          %p297 = scmp.lt.s32.totalorder %s29, 3
          %s298 = scalar_select %p297, %s29, 3
          %p299 = scmp.lt.s32.totalorder 0, 0
          %s300 = scalar_select %p299, 0, 0
          %s301 = sadd.s32 %s300, %s298
          %s302 = smul.addr %s301, 8
          %s303 = scalar_lea.vmem %s7, %s302
          %s305 = ssub.s32 1, 0
          %s306 = smul.u32 8, %s305
        $region36: #{residual_block.2} parent=31 // pred_fallthru
          _
        // Predicated region
        $region37: #{residual_block.2} parent=31 // pred_check
          %p307 = pneg %p86
        $region38: #{residual_block.2} parent=31 // pred_check_branch
          %309 = sbr.rel (%p307) target = $region40
        $region39: #{residual_block.2} parent=31 // pred_region
          %s310 = ssub.s32 1, %s30
          %s311 = smul.u32 8, %s310
          %p312 = scmp.lt.s32.totalorder %s29, 3
          %s313 = scalar_select %p312, %s29, 3
          %p314 = scmp.lt.s32.totalorder %s30, 0
          %s315 = scalar_select %p314, %s30, 0
          %s316 = sadd.s32 %s315, %s313
          %s317 = smul.addr %s316, 8
          %s318 = scalar_lea.vmem %s6, %s317
          %s319 = ssub.s32 1, %s30
          %s320 = smul.u32 8, %s319
        $region40: #{residual_block.2} parent=31 // pred_fallthru
          _
        // Predicated region
        $region41: #{residual_block.2} parent=31 // pred_check
          %p321 = pneg %p114
        $region42: #{residual_block.2} parent=31 // pred_check_branch
          %323 = sbr.rel (%p321) target = $region44
        $region43: #{residual_block.2} parent=31 // pred_region
          %s324 = ssub.s32 1, %s30
          %s325 = smul.u32 8, %s324
          %p326 = scmp.lt.s32.totalorder %s29, 3
          %s327 = scalar_select %p326, %s29, 3
          %p328 = scmp.lt.s32.totalorder %s30, 0
          %s329 = scalar_select %p328, %s30, 0
          %s330 = sadd.s32 %s329, %s327
          %s331 = smul.addr %s330, 8
          %s332 = scalar_lea.vmem %s4, %s331
          %s333 = ssub.s32 1, %s30
          %s334 = smul.u32 8, %s333
        $region44: #{residual_block.2} parent=31 // pred_fallthru
          _
      $region32: #{residual_block.2} parent=5 // pred_fallthru
        _
      %p335 = scmp.le.s32.totalorder 1, %s22
      %p336 = scmp.lt.s32.totalorder %s22, 5
      %p337 = pnand %p335, %p336
      %p338 = pneg %p337
      // Predicated region
      $region45: #{residual_block.2} parent=5 // pred_check
        _
      $region46: #{residual_block.2} parent=5 // pred_check_branch
        %340 = sbr.rel (%p337) target = $region48
      $region47: #{residual_block.2} parent=5 // pred_region
        #allocation20 [shape = 'u8[4096]{0}', space=vmem, size = 0x1000, dematerialized = true, scoped, tag = 'FusionAdapter Buffer %fusion.3 = f32[4,8,128]{2,1,0:T(8,128)} fusion(%param_7.2, %param_5.3), kind=kLoop, calls=%fused_computation.3.clone, metadata={op_name="jit(residual_block)/jit(_pad)/pad" stack_frame_id=10}']
        #allocation21 [shape = 'u8[4096]{0}', space=vmem, size = 0x1000, dematerialized = true, scoped, tag = 'FusionAdapter Buffer %fusion.2 = f32[4,8,128]{2,1,0:T(8,128)} fusion(%param_6.3, %param_5.3), kind=kLoop, calls=%fused_computation.2.clone, metadata={op_name="jit(residual_block)/jit(_pad)/pad" stack_frame_id=8}']
        #allocation22 [shape = 'u8[4096]{0}', space=vmem, size = 0x1000, dematerialized = true, scoped, tag = 'FusionAdapter Buffer %fusion.1 = f32[4,8,128]{2,1,0:T(8,128)} fusion(%param_4.3, %param_5.3), kind=kLoop, calls=%fused_computation.1.clone, metadata={op_name="jit(residual_block)/jit(_pad)/pad" stack_frame_id=13}']
        %s341 = ssub.s32 %s22, 1
        %s343 = ssub.s32 1, 0
        %s344 = smul.u32 8, %s343
        %p345 = scmp.lt.s32.totalorder %s31, 3
        %s346 = scalar_select %p345, %s31, 3
        %p347 = scmp.lt.s32.totalorder 0, 0
        %s348 = scalar_select %p347, 0, 0
        %s349 = sadd.s32 %s348, %s346
        %s350 = smul.addr %s349, 8
        %s351 = scalar_lea.vmem %s7, %s350
        %p352 = pneg %p64
        %p353 = pneg %p61
        %s354 = ssub.s32 1, %s32
        %s355 = smul.u32 8, %s354
        %p356 = scmp.lt.s32.totalorder %s31, 3
        %s357 = scalar_select %p356, %s31, 3
        %p358 = scmp.lt.s32.totalorder %s32, 0
        %s359 = scalar_select %p358, %s32, 0
        %s360 = sadd.s32 %s359, %s357
        %s361 = smul.addr %s360, 8
        %s362 = scalar_lea.vmem %s6, %s361
        %p363 = pneg %p92
        %p364 = pneg %p89
        %s365 = ssub.s32 1, %s32
        %s366 = smul.u32 8, %s365
        %p367 = scmp.lt.s32.totalorder %s31, 3
        %s368 = scalar_select %p367, %s31, 3
        %p369 = scmp.lt.s32.totalorder %s32, 0
        %s370 = scalar_select %p369, %s32, 0
        %s371 = sadd.s32 %s370, %s368
        %s372 = smul.addr %s371, 8
        %s373 = scalar_lea.vmem %s4, %s372
        %p374 = pneg %p120
        %p375 = pneg %p117
        %p376 = pneg %p141
        %p377 = pneg %p138
        %p378 = pneg %p162
        %p379 = pneg %p159
        %p380 = pneg %p183
        %p381 = pneg %p180
        %p382 = pneg %p204
        %p383 = pneg %p201
        %p384 = pneg %p232
        %p385 = pneg %p229
        %s386 = sand.u32 %s219, 1
        %s387 = scalar_lea.sflag [#allocation19], %s386
        %s388 = sand.u32 %s219, 1
        %s389 = smul.addr %s388, 8
        %s390 = scalar_lea.vmem [#allocation18], %s389
        %p391 = pneg %p260
        %p392 = pneg %p257
        %p393 = scmp.lt.s32.totalorder %s31, 3
        %s394 = scalar_select %p393, %s31, 3
        %p395 = scmp.lt.s32.totalorder %s32, 0
        %s396 = scalar_select %p395, %s32, 0
        %s397 = sadd.s32 %s396, %s394
        %s398 = smul.addr %s397, 4
        %s399 = scalar_lea.vmem %s9, %s398
        %s401 = ssub.s32 1, 0
        %s402 = smul.u32 8, %s401
        %p403 = scmp.lt.s32.totalorder %s31, 3
        %s404 = scalar_select %p403, %s31, 3
        %p405 = scmp.lt.s32.totalorder 0, 0
        %s406 = scalar_select %p405, 0, 0
        %s407 = sadd.s32 %s406, %s404
        %s408 = smul.addr %s407, 8
        %s409 = scalar_lea.vmem %s7, %s408
        %s411 = ssub.s32 1, 0
        %s412 = smul.u32 8, %s411
        %s413 = ssub.s32 1, %s32
        %s414 = smul.u32 8, %s413
        %p415 = scmp.lt.s32.totalorder %s31, 3
        %s416 = scalar_select %p415, %s31, 3
        %p417 = scmp.lt.s32.totalorder %s32, 0
        %s418 = scalar_select %p417, %s32, 0
        %s419 = sadd.s32 %s418, %s416
        %s420 = smul.addr %s419, 8
        %s421 = scalar_lea.vmem %s6, %s420
        %s422 = ssub.s32 1, %s32
        %s423 = smul.u32 8, %s422
        %s424 = ssub.s32 1, %s32
        %s425 = smul.u32 8, %s424
        %p426 = scmp.lt.s32.totalorder %s31, 3
        %s427 = scalar_select %p426, %s31, 3
        %p428 = scmp.lt.s32.totalorder %s32, 0
        %s429 = scalar_select %p428, %s32, 0
        %s430 = sadd.s32 %s429, %s427
        %s431 = smul.addr %s430, 8
        %s432 = scalar_lea.vmem %s4, %s431
        %s433 = ssub.s32 1, %s32
        %s434 = smul.u32 8, %s433
        %p435 = scmp.lt.s32.totalorder %s31, 3
        %s436 = scalar_select %p435, %s31, 3
        %p437 = scmp.lt.s32.totalorder %s32, 0
        %s438 = scalar_select %p437, %s32, 0
        %s439 = sadd.s32 %s438, %s436
        %s440 = smul.addr %s439, 4
        %s441 = scalar_lea.vmem %s9, %s440
        %s442 = ssub.s32 0, 0
        %p443 = scmp.lt.s32.totalorder %s442, 0
        %s444 = scalar_select %p443, 0, 255
        %v445 = vld [vmem:[%s409] sm:%s444]
        %v446 = vlaneseq
        %v447 = vand.u32 %v446, 127
        %v448 = vadd.s32 %v447, 128
        %vm449 = vcmp.lt.s32.totalorder %v448, 129
        %v450 = vsel %vm449, %v445, %v15
        %v451 = vlaneseq
        %v452 = vand.u32 %v451, 127
        %vm453 = vcmp.lt.s32.totalorder %v452, 1
        %v454 = vsel %vm453, %v450, %v15
        %455 = vrot.lane.b32.xlu0 %v454, 127
        %v456 = vpop.permute.xlu0 %455
        %s458 = ssub.s32 256, 1
        %459 = vst [vmem:[#allocation20] sm:%s458] %v456
        %s460 = ssub.s32 0, %s32
        %p461 = scmp.lt.s32.totalorder %s460, 0
        %s462 = scalar_select %p461, 0, 255
        %v463 = vld [vmem:[%s421] sm:%s462]
        %s464 = ssub.s32 0, %s32
        %v465 = vstv %s464
        %vm466 = vcmp.lt.s32.totalorder %v465, 0
        %v467 = vsel %vm466, %v16, %v463
        %s468 = smul.addr %s32, 128
        %v469 = vlaneseq
        %v470 = vand.u32 %v469, 127
        %v471 = vstv %s468
        %v472 = vadd.s32 %v470, %v471
        %vm473 = vcmp.lt.s32.totalorder %v472, 62
        %v474 = vsel %vm473, %v467, %v16
        %s476 = ssub.s32 256, 1
        %477 = vst [vmem:[#allocation21] sm:%s476] %v474
        %s478 = ssub.s32 0, %s32
        %p479 = scmp.lt.s32.totalorder %s478, 0
        %s480 = scalar_select %p479, 0, 255
        %v481 = vld [vmem:[%s432] sm:%s480]
        %s482 = ssub.s32 0, %s32
        %v483 = vstv %s482
        %vm484 = vcmp.lt.s32.totalorder %v483, 0
        %v485 = vsel %vm484, %v17, %v481
        %s486 = smul.addr %s32, 128
        %v487 = vlaneseq
        %v488 = vand.u32 %v487, 127
        %v489 = vstv %s486
        %v490 = vadd.s32 %v488, %v489
        %vm491 = vcmp.lt.s32.totalorder %v490, 62
        %v492 = vsel %vm491, %v485, %v17
        %s494 = ssub.s32 256, 1
        %495 = vst [vmem:[#allocation22] sm:%s494] %v492
        %p496 = scmp.eq.s32.totalorder %s32, 0
        // Predicated region
        $region49: #{residual_block.2} parent=47 // pred_check
          %p497 = pneg %p496
        $region50: #{residual_block.2} parent=47 // pred_check_branch
          %499 = sbr.rel (%p497) target = $region52
        $region51: #{residual_block.2} parent=47 // pred_region
          %v500 = vld [vmem:[#allocation20] sm:$0xff]
          %501 = vst [vmem:[#allocation2] sm:$0xff] %v500
        $region52: #{residual_block.2} parent=47 // pred_fallthru
          _
        %v502 = vld [vmem:[#allocation21] sm:$0xff]
        %v503 = vld [vmem:[#allocation2] sm:$0xff]
        %504 = vst [vmem:[#allocation2] sm:$0xff] %v502
        %v505 = vld [vmem:[%s0] sm:$0xff]
        %s506 = scalar_lea.vmem %s0, 8
        %v507 = vld [vmem:[%s506] sm:$0xff]
        %vm508 = vcmask 64512
        %v510 = vsel %vm508, %v507, 0
        %512 = vmatpush.msra.mxu0 0.0
        %513 = vmatpush.msra.mxu0 0.0
        %514 = vmatpush.msra.mxu0 0.0
        %515 = vmatpush.msra.mxu0 0.0
        %516 = vmatpush.msra.mxu0 0.0
        %517 = vmatpush.msra.mxu0 0.0
        %518 = vmatpush.msra.mxu0 0.0
        %519 = vmatpush.msra.mxu0 0.0
        %520 = vmatpush.msra.mxu0 0.0
        %521 = vmatpush.msra.mxu0 0.0
        %522 = vmatpush.msra.mxu0 0.0
        %523 = vmatpush.msra.mxu0 0.0
        %524 = vmatpush.msra.mxu0 0.0
        %525 = vmatpush.msra.mxu0 0.0
        %526 = vmatpush.msra.mxu0 0.0
        %527 = vmatpush.msra.mxu0 %v502
        %528 = vmatmul.f32.gmra.mxu0 %v510
        %v529 = vpop.f32.mrf.mxu0
        %v530 = vadd.f32 0.0, %v529
        %531 = vdwg.mxu0
        %534 = vrot.lane.b32.xlu0 %v503, 2
        %v535 = vpop.permute.xlu0 %534
        %536 = vrot.lane.b32.xlu0 %v502, 2
        %v537 = vpop.permute.xlu0 %536
        %vm538 = vcmask 15360
        %v539 = vsel %vm538, %v535, %v537
        %v542 = vsel %vm508, %v505, 0
        %544 = vmatpush.msra.mxu0 0.0
        %545 = vmatpush.msra.mxu0 0.0
        %546 = vmatpush.msra.mxu0 0.0
        %547 = vmatpush.msra.mxu0 0.0
        %548 = vmatpush.msra.mxu0 0.0
        %549 = vmatpush.msra.mxu0 0.0
        %550 = vmatpush.msra.mxu0 0.0
        %551 = vmatpush.msra.mxu0 0.0
        %552 = vmatpush.msra.mxu0 0.0
        %553 = vmatpush.msra.mxu0 0.0
        %554 = vmatpush.msra.mxu0 0.0
        %555 = vmatpush.msra.mxu0 0.0
        %556 = vmatpush.msra.mxu0 0.0
        %557 = vmatpush.msra.mxu0 0.0
        %558 = vmatpush.msra.mxu0 0.0
        %559 = vmatpush.msra.mxu0 %v539
        %560 = vmatmul.f32.gmra.mxu0 %v542
        %v561 = vpop.f32.mrf.mxu0
        %v562 = vadd.f32 %v530, %v561
        %563 = vdwg.mxu0
        %v564 = vmax.f32 %v562, 0.0
        %v565 = vtanh.pop %v562
        %v566 = vmul.f32 %v564, %v565
        %v567 = vld [vmem:[%s1] sm:$0xff]
        %v568 = vld [vmem:[#allocation22] sm:$0xff]
        %v570 = vsel %vm508, %v567, 0
        %572 = vmatpush.msra.mxu0 0.0
        %573 = vmatpush.msra.mxu0 0.0
        %574 = vmatpush.msra.mxu0 0.0
        %575 = vmatpush.msra.mxu0 0.0
        %576 = vmatpush.msra.mxu0 0.0
        %577 = vmatpush.msra.mxu0 0.0
        %578 = vmatpush.msra.mxu0 0.0
        %579 = vmatpush.msra.mxu0 0.0
        %580 = vmatpush.msra.mxu0 0.0
        %581 = vmatpush.msra.mxu0 0.0
        %582 = vmatpush.msra.mxu0 0.0
        %583 = vmatpush.msra.mxu0 0.0
        %584 = vmatpush.msra.mxu0 0.0
        %585 = vmatpush.msra.mxu0 0.0
        %586 = vmatpush.msra.mxu0 0.0
        %587 = vmatpush.msra.mxu0 %v566
        %588 = vmatmul.f32.gmra.mxu0 %v570
        %v589 = vpop.f32.mrf.mxu0
        %v590 = vadd.f32 %v568, %v589
        %591 = vdwg.mxu0
        %592 = vst [vmem:[%s390] sm:$0xff] %v590
        %v593 = vld [vmem:[%s2] sm:$0xf]
        %v594 = vld [vmem:[%s3] sm:$0xf]
        %596 = vset.pattern.permute.xlu0 0
        %597 = vperm.xlu0 %596, %v594
        %v598 = vpop.permute.xlu0 %597
        %v601 = vsel %vm508, %v593, 0
        %603 = vmatpush.msra.mxu0 0.0
        %604 = vmatpush.msra.mxu0 0.0
        %605 = vmatpush.msra.mxu0 0.0
        %606 = vmatpush.msra.mxu0 0.0
        %607 = vmatpush.msra.mxu0 0.0
        %608 = vmatpush.msra.mxu0 0.0
        %609 = vmatpush.msra.mxu0 0.0
        %610 = vmatpush.msra.mxu0 0.0
        %611 = vmatpush.msra.mxu0 0.0
        %612 = vmatpush.msra.mxu0 0.0
        %613 = vmatpush.msra.mxu0 0.0
        %614 = vmatpush.msra.mxu0 0.0
        %615 = vmatpush.msra.mxu0 0.0
        %616 = vmatpush.msra.mxu0 0.0
        %617 = vmatpush.msra.mxu0 0.0
        %618 = vmatpush.msra.mxu0 %v566
        %619 = vmatmul.f32.gmra.mxu0 %v601
        %v620 = vpop.f32.mrf.mxu0
        %v621 = vadd.f32 %v598, %v620
        %622 = vdwg.mxu0
        %623 = vst [vmem:[%s441] sm:$0xf] %v621
        %s624 = sand.u32 %s219, 1
        %s625 = scalar_lea.sflag [#allocation19], %s624
        %s626 = sand.u32 %s219, 1
        %s627 = smul.addr %s626, 8
        %s628 = scalar_lea.vmem [#allocation18], %s627
        %p629 = scmp.lt.s32.totalorder %s31, 3
        %s630 = scalar_select %p629, %s31, 3
        %p631 = scmp.lt.s32.totalorder %s32, 0
        %s632 = scalar_select %p631, %s32, 0
        %s633 = sadd.s32 %s632, %s630
        %s634 = smul.addr %s633, 4
        %s635 = scalar_lea.vmem %s9, %s634
        // Predicated region
        $region53: #{residual_block.2} parent=47 // pred_check
          %p636 = pneg %p229
        $region54: #{residual_block.2} parent=47 // pred_check_branch
          %638 = sbr.rel (%p636) target = $region56
        $region55: #{residual_block.2} parent=47 // pred_region
          %640 = vsyncadd %s625, 0
          %s641 = sadd.s32 %s32, %s31
          %s642 = smul.addr %s641, 8
          %s643 = scalar_lea.hbm %s8, %s642
          %s645 = sshll.u32 %s628, 4
          %s646 = int_to_ptr.vmem [resolvable:$true] %s645
          %s647 = sshll.u32 %s643, 4
          %s648 = int_to_ptr.hbm [resolvable:$true] %s647
          %650 = dma.vmem_to_hbm [thread:$0]  %s646, 128, %s648, %s625
        $region56: #{residual_block.2} parent=47 // pred_fallthru
          _
        // Predicated region
        $region57: #{residual_block.2} parent=47 // pred_check
          %p651 = pneg %p257
        $region58: #{residual_block.2} parent=47 // pred_check_branch
          %653 = sbr.rel (%p651) target = $region60
        $region59: #{residual_block.2} parent=47 // pred_region
          _
        $region60: #{residual_block.2} parent=47 // pred_fallthru
          _
      $region48: #{residual_block.2} parent=5 // pred_fallthru
        _
      %p654 = scmp.le.s32.totalorder 2, %s22
      // Predicated region
      $region61: #{residual_block.2} parent=5 // pred_check
        %p655 = pneg %p654
      $region62: #{residual_block.2} parent=5 // pred_check_branch
        %657 = sbr.rel (%p655) target = $region64
      $region63: #{residual_block.2} parent=5 // pred_region
        %s658 = ssub.s32 %s22, 2
        // Predicated region
        $region65: #{residual_block.2} parent=63 // pred_check
          %p659 = pneg %p235
        $region66: #{residual_block.2} parent=63 // pred_check_branch
          %661 = sbr.rel (%p659) target = $region68
        $region67: #{residual_block.2} parent=63 // pred_region
          %s662 = sand.u32 %s220, 1
          %s663 = scalar_lea.sflag [#allocation19], %s662
          %s664 = sand.u32 %s220, 1
          %s665 = smul.addr %s664, 8
          %s666 = scalar_lea.vmem [#allocation18], %s665
          %668 = dma.done %s663, 128
        $region68: #{residual_block.2} parent=63 // pred_fallthru
          _
        // Predicated region
        $region69: #{residual_block.2} parent=63 // pred_check
          %p669 = pneg %p263
        $region70: #{residual_block.2} parent=63 // pred_check_branch
          %671 = sbr.rel (%p669) target = $region72
        $region71: #{residual_block.2} parent=63 // pred_region
          %p672 = scmp.lt.s32.totalorder %s33, 3
          %s673 = scalar_select %p672, %s33, 3
          %p674 = scmp.lt.s32.totalorder %s34, 0
          %s675 = scalar_select %p674, %s34, 0
          %s676 = sadd.s32 %s675, %s673
          %s677 = smul.addr %s676, 4
          %s678 = scalar_lea.vmem %s9, %s677
        $region72: #{residual_block.2} parent=63 // pred_fallthru
          _
      $region64: #{residual_block.2} parent=5 // pred_fallthru
        _
    $region6: #{residual_block.2} parent=1 // loop_footer
      %s26 = sadd.s32 1, %s22
    $region7: #{residual_block.2} parent=1 // loop_footer_branch
      %21 = sbr.rel target = $region3
    $region8: #{residual_block.2} parent=1 // loop_exit
      _
    %679 = vsyncpa [#allocation19], 1
    %s680 = scalar_lea.sflag [#allocation19], 1
    %681 = vsyncpa %s680, 1

</llo_original>
